<compile_context>
chip_gen: v7x
topology: tpu7x:2x2x1
jax: 0.10.0
libtpu: 0.0.40
codegen_flags: <defaults>
</compile_context>

<pallas_src>
import functools
import math

import jax
import jax.numpy as jnp
from jax.experimental import pallas as pl
from jax.experimental.pallas import tpu as pltpu


def _attention_kernel(q_ref, k_ref, v_ref, mask_ref, wq_ref, wk_ref, wv_ref,
                      o_ref, kh_scr, vh_scr, *, causal, q_tile):
    """Fused single-head attention for one (batch, q-tile) grid cell."""
    f32 = jnp.float32
    qi = pl.program_id(1)

    # K/V projections hoisted out of the q-tile loop: the q-tile axis is the
    # inner "arbitrary" grid axis, so this scratch persists across all q tiles
    # of the current batch element and is recomputed only when the batch
    # changes (qi == 0).  bf16 MXU operands, f32 accumulation/storage.
    @pl.when(qi == 0)
    def _():
        kh_scr[...] = jnp.dot(k_ref[0], wk_ref[...], preferred_element_type=f32)
        vh_scr[...] = jnp.dot(v_ref[0], wv_ref[...], preferred_element_type=f32)

    # Q projection for this tile (1/sqrt(att_dim) is pre-folded into wq).
    qh = jnp.dot(q_ref[0], wq_ref[...], preferred_element_type=f32)

    # scores = qh . kh^T (contraction over att_dim, no materialized transpose).
    s = jax.lax.dot_general(qh, kh_scr[...],
                            dimension_numbers=(((1,), (1,)), ((), ())),
                            preferred_element_type=f32)

    # Pad mask: torch `masked_fill(mask_pad == 0, -1e20)`; mask is a bf16 0/1
    # stream, the fill value is an exact f32 -1e20 (keeps all-masked rows
    # bit-identical to the reference -> uniform softmax).
    s = jnp.where(mask_ref[0] == 0, -1e20, s)

    if causal:
        # Faithful to torch: qk = tril(qk); qk = masked_fill(qk == 0, -1e20)
        # (also remaps exact-zero lower-triangle scores, as the reference does),
        # fused into a single predicate + select with broadcast iotas.
        tq, sk = s.shape
        row = qi * q_tile + jax.lax.broadcasted_iota(jnp.int32, (tq, 1), 0)
        col = jax.lax.broadcasted_iota(jnp.int32, (1, sk), 1)
        dead = (col > row) | (s == 0.0)
        s = jnp.where(dead, -1e20, s)

    # Softmax over keys (f32 element-wise math; reciprocal on the EUP slot).
    m = jnp.max(s, axis=-1, keepdims=True)
    e = jnp.exp(s - m)
    p = e * pl.reciprocal(jnp.sum(e, axis=-1, keepdims=True), approx=True)

    # TODO(synk): dropout with p > 0 not implemented (reference default p=0 is identity).
    o_ref[0] = jnp.dot(p, vh_scr[...],
                       preferred_element_type=f32).astype(o_ref.dtype)


def attention(params, q, k, v, mask_pad, *, causal=False, q_tile=None,
              stream_dtype=jnp.bfloat16):
    """Pallas port of `Attention.forward`.

    q: (B, Sq, D); k, v: (B, Sk, D); mask_pad: (B, Sq, Sk) with 0 = masked.
    params: {"wq", "wk", "wv"} each of shape (D, att_dim).
    Returns (B, Sq, att_dim) float32.
    """
    B, Sq, D = q.shape
    Sk = k.shape[1]
    Da = params["wq"].shape[1]

    if q_tile is None:
        if Sq <= 256:
            q_tile = Sq
        elif Sq % 256 == 0:
            q_tile = 256
        elif Sq % 128 == 0:
            q_tile = 128
        else:
            q_tile = Sq
    assert Sq % q_tile == 0, "Sq must be a multiple of the q tile size"
    grid = (B, Sq // q_tile)

    # Host-side prep: fold the softmax scale into wq (compile-time constant),
    # stream every matmul operand in bf16, and shrink the mask stream to a
    # bf16 0/1 tensor.
    scale = 1.0 / math.sqrt(Da)
    wq = (params["wq"].astype(jnp.float32) * scale).astype(stream_dtype)
    wk = params["wk"].astype(stream_dtype)
    wv = params["wv"].astype(stream_dtype)
    qs = q.astype(stream_dtype)
    ks = k.astype(stream_dtype)
    vs = v.astype(stream_dtype)
    mask = (mask_pad != 0).astype(stream_dtype)

    kernel = functools.partial(_attention_kernel, causal=causal, q_tile=q_tile)
    return pl.pallas_call(
        kernel,
        out_shape=jax.ShapeDtypeStruct((B, Sq, Da), jnp.float32),
        grid_spec=pltpu.PrefetchScalarGridSpec(
            num_scalar_prefetch=0,
            grid=grid,
            in_specs=[
                pl.BlockSpec((1, q_tile, D), lambda b, i: (b, i, 0)),    # q tile
                pl.BlockSpec((1, Sk, D), lambda b, i: (b, 0, 0)),        # k (DMA once/batch)
                pl.BlockSpec((1, Sk, D), lambda b, i: (b, 0, 0)),        # v (DMA once/batch)
                pl.BlockSpec((1, q_tile, Sk), lambda b, i: (b, i, 0)),   # pad mask (bf16 0/1)
                pl.BlockSpec((D, Da), lambda b, i: (0, 0)),              # wq (DMA once)
                pl.BlockSpec((D, Da), lambda b, i: (0, 0)),              # wk
                pl.BlockSpec((D, Da), lambda b, i: (0, 0)),              # wv
            ],
            out_specs=pl.BlockSpec((1, q_tile, Da), lambda b, i: (b, i, 0)),
            scratch_shapes=[
                pltpu.VMEM((Sk, Da), jnp.float32),   # kh (persists across q tiles)
                pltpu.VMEM((Sk, Da), jnp.float32),   # vh (persists across q tiles)
            ],
        ),
        compiler_params=pltpu.CompilerParams(
            dimension_semantics=("parallel", "arbitrary"),
            vmem_limit_bytes=48 * 1024 * 1024,
        ),
    )(qs, ks, vs, mask, wq, wk, wv)


def attention_reference(params, q, k, v, mask_pad, *, causal=False):
    """Pure-JAX mirror of the torch forward (for validation)."""
    Da = params["wq"].shape[1]
    qh = jnp.einsum("bsd,de->bse", q, params["wq"])
    kh = jnp.einsum("bsd,de->bse", k, params["wk"])
    vh = jnp.einsum("bsd,de->bse", v, params["wv"])
    s = jnp.einsum("bqe,bke->bqk", qh, kh) / math.sqrt(Da)
    s = jnp.where(mask_pad == 0, -1e20, s)
    if causal:
        s = jnp.tril(s)
        s = jnp.where(s == 0.0, -1e20, s)
    p = jax.nn.softmax(s, axis=2)
    return jnp.einsum("bqk,bke->bqe", p, vh)


if __name__ == "__main__":
    B, S, EMB_DIM, ATT_DIM = 2, 8, 32, 16

    root = jax.random.PRNGKey(0)
    kq, kk, kv, kw = jax.random.split(root, 4)
    kwq, kwk, kwv = jax.random.split(kw, 3)
    params = {
        "wq": jax.random.normal(kwq, (EMB_DIM, ATT_DIM), jnp.float32) * 0.1,
        "wk": jax.random.normal(kwk, (EMB_DIM, ATT_DIM), jnp.float32) * 0.1,
        "wv": jax.random.normal(kwv, (EMB_DIM, ATT_DIM), jnp.float32) * 0.1,
    }
    q = jax.random.normal(kq, (B, S, EMB_DIM), jnp.float32)
    k = jax.random.normal(kk, (B, S, EMB_DIM), jnp.float32)
    v = jax.random.normal(kv, (B, S, EMB_DIM), jnp.float32)

    # Pad mask as in the surrounding transformer: outer product of validity
    # vectors, with the last two positions padded.
    valid = jnp.ones((B, S), jnp.float32).at[:, -2:].set(0.0)
    mask_pad = valid[:, :, None] * valid[:, None, :]

    fwd = jax.jit(functools.partial(attention, params, causal=False))
    fwd_causal = jax.jit(functools.partial(attention, params, causal=True))

    out = fwd(q, k, v, mask_pad)
    out_c = fwd_causal(q, k, v, mask_pad)
    jax.block_until_ready((out, out_c))

    ref = attention_reference(params, q, k, v, mask_pad, causal=False)
    ref_c = attention_reference(params, q, k, v, mask_pad, causal=True)

    assert out.shape == (B, S, ATT_DIM) and out_c.shape == (B, S, ATT_DIM)
    assert bool(jnp.all(jnp.isfinite(out))) and bool(jnp.all(jnp.isfinite(out_c)))
    err = float(jnp.max(jnp.abs(out - ref)))
    err_c = float(jnp.max(jnp.abs(out_c - ref_c)))
    # Loose tolerance: bf16 input/weight streams + approximate EUP reciprocal.
    assert err < 0.1 and err_c < 0.1, (err, err_c)
    print("KERNEL_OK")
</pallas_src>

<mosaic_0001>
module attributes {stable_mosaic.version = 11 : i64} {
  func.func @_attention_kernel(%arg0: i32, %arg1: i32, %arg2: memref<1x8x32xbf16, #tpu.memory_space<vmem>>, %arg3: memref<1x8x32xbf16, #tpu.memory_space<vmem>>, %arg4: memref<1x8x32xbf16, #tpu.memory_space<vmem>>, %arg5: memref<1x8x8xbf16, #tpu.memory_space<vmem>>, %arg6: memref<32x16xbf16, #tpu.memory_space<vmem>>, %arg7: memref<32x16xbf16, #tpu.memory_space<vmem>>, %arg8: memref<32x16xbf16, #tpu.memory_space<vmem>>, %arg9: memref<1x8x16xf32, #tpu.memory_space<vmem>>, %arg10: memref<8x16xf32, #tpu.memory_space<vmem>>, %arg11: memref<8x16xf32, #tpu.memory_space<vmem>>) attributes {dimension_semantics = [#tpu.dimension_semantics<parallel>, #tpu.dimension_semantics<arbitrary>], iteration_bounds = array<i64: 2, 1>, scalar_prefetch = 0 : i64, scratch_operands = 2 : i64, tpu.core_type = #tpu.core_type<tc>, window_params = [{transform_indices = @transform_0, window_bounds = array<i64: 1, 8, 32>}, {transform_indices = @transform_1, window_bounds = array<i64: 1, 8, 32>}, {transform_indices = @transform_2, window_bounds = array<i64: 1, 8, 32>}, {transform_indices = @transform_3, window_bounds = array<i64: 1, 8, 8>}, {pipeline_mode = #tpu.pipeline_mode<synchronous>, transform_indices = @transform_4, window_bounds = array<i64: 32, 16>}, {pipeline_mode = #tpu.pipeline_mode<synchronous>, transform_indices = @transform_5, window_bounds = array<i64: 32, 16>}, {pipeline_mode = #tpu.pipeline_mode<synchronous>, transform_indices = @transform_6, window_bounds = array<i64: 32, 16>}, {transform_indices = @transform_7, window_bounds = array<i64: 1, 8, 16>}]} {
    %c0_i32 = arith.constant 0 : i32
    %0 = arith.cmpi eq, %arg1, %c0_i32 : i32
    %1 = arith.extui %0 : i1 to i32
    %c0_i32_0 = arith.constant 0 : i32
    %2 = arith.cmpi ne, %1, %c0_i32_0 : i32
    scf.if %2 {
      %c0_21 = arith.constant 0 : index
      %c0_22 = arith.constant 0 : index
      %c0_23 = arith.constant 0 : index
      %30 = vector.load %arg3[%c0_21, %c0_22, %c0_23] : memref<1x8x32xbf16, #tpu.memory_space<vmem>>, vector<1x8x32xbf16>
      %31 = vector.shape_cast %30 : vector<1x8x32xbf16> to vector<8x32xbf16>
      %c0_24 = arith.constant 0 : index
      %c0_25 = arith.constant 0 : index
      %32 = vector.load %arg7[%c0_24, %c0_25] : memref<32x16xbf16, #tpu.memory_space<vmem>>, vector<32x16xbf16>
      %cst_26 = arith.constant dense<0.000000e+00> : vector<8x16xf32>
      %33 = tpu.matmul %31, %32, %cst_26 {dimension_numbers = #tpu.dot_dimension_numbers<[1], [0], [0], [1], [0, 0, 1, 1], [], []>} : vector<8x32xbf16>, vector<32x16xbf16>, vector<8x16xf32> -> vector<8x16xf32>
      %c0_27 = arith.constant 0 : index
      %c0_28 = arith.constant 0 : index
      %34 = vector.load %arg10[%c0_27, %c0_28] : memref<8x16xf32, #tpu.memory_space<vmem>>, vector<8x16xf32>
      tpu.vector_store %arg10[%c0_27, %c0_28], %33 {strides = array<i32>} : memref<8x16xf32, #tpu.memory_space<vmem>>, vector<8x16xf32>,
      %c0_29 = arith.constant 0 : index
      %c0_30 = arith.constant 0 : index
      %c0_31 = arith.constant 0 : index
      %35 = vector.load %arg4[%c0_29, %c0_30, %c0_31] : memref<1x8x32xbf16, #tpu.memory_space<vmem>>, vector<1x8x32xbf16>
      %36 = vector.shape_cast %35 : vector<1x8x32xbf16> to vector<8x32xbf16>
      %c0_32 = arith.constant 0 : index
      %c0_33 = arith.constant 0 : index
      %37 = vector.load %arg8[%c0_32, %c0_33] : memref<32x16xbf16, #tpu.memory_space<vmem>>, vector<32x16xbf16>
      %cst_34 = arith.constant dense<0.000000e+00> : vector<8x16xf32>
      %38 = tpu.matmul %36, %37, %cst_34 {dimension_numbers = #tpu.dot_dimension_numbers<[1], [0], [0], [1], [0, 0, 1, 1], [], []>} : vector<8x32xbf16>, vector<32x16xbf16>, vector<8x16xf32> -> vector<8x16xf32>
      %c0_35 = arith.constant 0 : index
      %c0_36 = arith.constant 0 : index
      %39 = vector.load %arg11[%c0_35, %c0_36] : memref<8x16xf32, #tpu.memory_space<vmem>>, vector<8x16xf32>
      tpu.vector_store %arg11[%c0_35, %c0_36], %38 {strides = array<i32>} : memref<8x16xf32, #tpu.memory_space<vmem>>, vector<8x16xf32>,
    } else {
    }
    %c0 = arith.constant 0 : index
    %c0_1 = arith.constant 0 : index
    %c0_2 = arith.constant 0 : index
    %3 = vector.load %arg2[%c0, %c0_1, %c0_2] : memref<1x8x32xbf16, #tpu.memory_space<vmem>>, vector<1x8x32xbf16>
    %4 = vector.shape_cast %3 : vector<1x8x32xbf16> to vector<8x32xbf16>
    %c0_3 = arith.constant 0 : index
    %c0_4 = arith.constant 0 : index
    %5 = vector.load %arg6[%c0_3, %c0_4] : memref<32x16xbf16, #tpu.memory_space<vmem>>, vector<32x16xbf16>
    %cst = arith.constant dense<0.000000e+00> : vector<8x16xf32>
    %6 = tpu.matmul %4, %5, %cst {dimension_numbers = #tpu.dot_dimension_numbers<[1], [0], [0], [1], [0, 0, 1, 1], [], []>} : vector<8x32xbf16>, vector<32x16xbf16>, vector<8x16xf32> -> vector<8x16xf32>
    %c0_5 = arith.constant 0 : index
    %c0_6 = arith.constant 0 : index
    %7 = vector.load %arg10[%c0_5, %c0_6] : memref<8x16xf32, #tpu.memory_space<vmem>>, vector<8x16xf32>
    %cst_7 = arith.constant dense<0.000000e+00> : vector<8x8xf32>
    %8 = tpu.matmul %6, %7, %cst_7 {dimension_numbers = #tpu.dot_dimension_numbers<[1], [1], [0], [0], [0, 0, 1, 0], [], []>} : vector<8x16xf32>, vector<8x16xf32>, vector<8x8xf32> -> vector<8x8xf32>
    %c0_8 = arith.constant 0 : index
    %c0_9 = arith.constant 0 : index
    %c0_10 = arith.constant 0 : index
    %9 = vector.load %arg5[%c0_8, %c0_9, %c0_10] : memref<1x8x8xbf16, #tpu.memory_space<vmem>>, vector<1x8x8xbf16>
    %10 = vector.shape_cast %9 : vector<1x8x8xbf16> to vector<8x8xbf16>
    %cst_11 = arith.constant 0.000000e+00 : bf16
    %11 = vector.broadcast %cst_11 : bf16 to vector<8x8xbf16>
    %12 = arith.cmpf oeq, %10, %11 : vector<8x8xbf16>
    %cst_12 = arith.constant -1.000000e+20 : f32
    %13 = vector.broadcast %cst_12 : f32 to vector<8x8xf32>
    %14 = arith.select %12, %13, %8 : vector<8x8xi1>, vector<8x8xf32>
    %cst_13 = arith.constant dense<0xFF800000> : vector<8xf32>
    %15 = vector.multi_reduction <maximumf>, %14, %cst_13 [1] : vector<8x8xf32> to vector<8xf32>
    %16 = vector.shape_cast %15 : vector<8xf32> to vector<8x1xf32>
    %17 = vector.broadcast %16 : vector<8x1xf32> to vector<8x8xf32>
    %18 = arith.subf %14, %17 : vector<8x8xf32>
    %19 = math.exp %18 : vector<8x8xf32>
    %cst_14 = arith.constant dense<0.000000e+00> : vector<8xf32>
    %20 = vector.multi_reduction <add>, %19, %cst_14 [1] : vector<8x8xf32> to vector<8xf32>
    %21 = vector.shape_cast %20 : vector<8xf32> to vector<8x1xf32>
    %22 = tpu.reciprocal %21 {approx = true} : vector<8x1xf32> -> vector<8x1xf32>
    %23 = vector.broadcast %22 : vector<8x1xf32> to vector<8x8xf32>
    %24 = arith.mulf %19, %23 : vector<8x8xf32>
    %c0_15 = arith.constant 0 : index
    %c0_16 = arith.constant 0 : index
    %25 = vector.load %arg11[%c0_15, %c0_16] : memref<8x16xf32, #tpu.memory_space<vmem>>, vector<8x16xf32>
    %cst_17 = arith.constant dense<0.000000e+00> : vector<8x16xf32>
    %26 = tpu.matmul %24, %25, %cst_17 {dimension_numbers = #tpu.dot_dimension_numbers<[1], [0], [0], [1], [0, 0, 1, 1], [], []>} : vector<8x8xf32>, vector<8x16xf32>, vector<8x16xf32> -> vector<8x16xf32>
    %c0_18 = arith.constant 0 : index
    %c0_19 = arith.constant 0 : index
    %c0_20 = arith.constant 0 : index
    %27 = vector.load %arg9[%c0_18, %c0_19, %c0_20] : memref<1x8x16xf32, #tpu.memory_space<vmem>>, vector<1x8x16xf32>
    %28 = vector.shape_cast %27 : vector<1x8x16xf32> to vector<8x16xf32>
    %29 = vector.shape_cast %26 : vector<8x16xf32> to vector<1x8x16xf32>
    tpu.vector_store %arg9[%c0_18, %c0_19, %c0_20], %29 {strides = array<i32>} : memref<1x8x16xf32, #tpu.memory_space<vmem>>, vector<1x8x16xf32>,
    return
  }
  func.func @transform_0(%arg0: i32, %arg1: i32) -> (i32, i32, i32) {
    %c0_i32 = arith.constant 0 : i32
    %c0_i32_0 = arith.constant 0 : i32
    return %arg0, %arg1, %c0_i32 : i32, i32, i32
  }
  func.func @transform_1(%arg0: i32, %arg1: i32) -> (i32, i32, i32) {
    %c0_i32 = arith.constant 0 : i32
    %c0_i32_0 = arith.constant 0 : i32
    %c0_i32_1 = arith.constant 0 : i32
    return %arg0, %c0_i32, %c0_i32_0 : i32, i32, i32
  }
  func.func @transform_2(%arg0: i32, %arg1: i32) -> (i32, i32, i32) {
    %c0_i32 = arith.constant 0 : i32
    %c0_i32_0 = arith.constant 0 : i32
    %c0_i32_1 = arith.constant 0 : i32
    return %arg0, %c0_i32, %c0_i32_0 : i32, i32, i32
  }
  func.func @transform_3(%arg0: i32, %arg1: i32) -> (i32, i32, i32) {
    %c0_i32 = arith.constant 0 : i32
    %c0_i32_0 = arith.constant 0 : i32
    return %arg0, %arg1, %c0_i32 : i32, i32, i32
  }
  func.func @transform_4(%arg0: i32, %arg1: i32) -> (i32, i32) {
    %c0_i32 = arith.constant 0 : i32
    %c0_i32_0 = arith.constant 0 : i32
    %c0_i32_1 = arith.constant 0 : i32
    return %c0_i32, %c0_i32_0 : i32, i32
  }
  func.func @transform_5(%arg0: i32, %arg1: i32) -> (i32, i32) {
    %c0_i32 = arith.constant 0 : i32
    %c0_i32_0 = arith.constant 0 : i32
    %c0_i32_1 = arith.constant 0 : i32
    return %c0_i32, %c0_i32_0 : i32, i32
  }
  func.func @transform_6(%arg0: i32, %arg1: i32) -> (i32, i32) {
    %c0_i32 = arith.constant 0 : i32
    %c0_i32_0 = arith.constant 0 : i32
    %c0_i32_1 = arith.constant 0 : i32
    return %c0_i32, %c0_i32_0 : i32, i32
  }
  func.func @transform_7(%arg0: i32, %arg1: i32) -> (i32, i32, i32) {
    %c0_i32 = arith.constant 0 : i32
    %c0_i32_0 = arith.constant 0 : i32
    return %arg0, %arg1, %c0_i32 : i32, i32, i32
  }
}

</mosaic_0001>

<llo_original>
// kernel: attention.1
$region0: #{attention.1}
  #allocation0 [shape = 'u32[]', space=smem, size = 0x4, offset = 0x4, fixed_abs, tag = 'smem constant byte address 0x4 - core index']
  #allocation1 [shape = 'u32[144,128]{1,0:T(1,128)}', space=vmem, size = 0x12000, scoped, tag = 'internal scratch']
  #allocation2 [shape = 'f32[8,16]{1,0:T(8,128)}', space=vmem, size = 0x1000, scoped, tag = 'scratch operand']
  #allocation3 [shape = 'f32[8,16]{1,0:T(8,128)}', space=vmem, size = 0x1000, scoped, tag = 'scratch operand']
  %s0 = inlined_call_operand.vmem [shape: bf16[2,8,32], index: 0, kind: input, shape index: {}]
  %s1 = inlined_call_operand.vmem [shape: bf16[2,8,32], index: 1, kind: input, shape index: {}]
  %s2 = inlined_call_operand.vmem [shape: bf16[2,8,32], index: 2, kind: input, shape index: {}]
  %s3 = inlined_call_operand.vmem [shape: bf16[2,8,8], index: 3, kind: input, shape index: {}]
  %s4 = inlined_call_operand.vmem [shape: bf16[32,16], index: 4, kind: input, shape index: {}]
  %s5 = inlined_call_operand.vmem [shape: bf16[32,16], index: 5, kind: input, shape index: {}]
  %s6 = inlined_call_operand.vmem [shape: bf16[32,16], index: 6, kind: input, shape index: {}]
  %s7 = inlined_call_operand.hbm [shape: f32[2,8,16], index: 7, kind: output, shape index: {}]
  %s8 = sld [smem:[#allocation0]]
  $region65: #{attention.1} parent=0
    _
  %s10 = ssub.s32 1, %s8
  %s11 = scalar_select 0, %s10, %s8
  $region1: #{attention.1} parent=0
    #allocation4 [shape = 'u8[8192]{0}', space=vmem, size = 0x2000, scoped, tag = 'output window, operand 0']
    #allocation5 [shape = 's32[2]{0}', space=sflag, size = 0x8, scoped, tag = 'scoped memory for attention.1']
    %12 = vsyncpa [#allocation5], 0
    %s13 = scalar_lea.sflag [#allocation5], 1
    %14 = vsyncpa %s13, 0
    loop: start=0, step=1, limit=4
    $region2: #{attention.1} parent=1 // loop_pre_header
      _
    $region3: #{attention.1} parent=1 // loop_header
      %s16 = sphi 0, %s20
      %p17 = scmp.ge.s32.totalorder %s16, 4
      %s23 = sphi 0, %s35
      %s24 = sphi 0, %s31
      %s25 = sphi 0, %s23
      %s26 = sphi 0, %s24
      %s27 = sphi 0, %s25
      %s28 = sphi 0, %s26
      %s40 = sphi 0, %s42
      %s43 = sphi 0, %s40
      %s44 = sphi 0, %s43
      %s60 = sphi 0, %s44
      %s66 = sphi 0, %s68
      %s69 = sphi 0, %s66
      %s70 = sphi 0, %s69
      %s86 = sphi 0, %s70
      %s92 = sphi 0, %s94
      %s95 = sphi 0, %s92
      %s96 = sphi 0, %s95
      %s112 = sphi 0, %s96
      %s120 = sphi 0, %s122
      %s123 = sphi 0, %s120
      %s124 = sphi 0, %s123
      %s140 = sphi 0, %s124
      %s144 = sphi 0, %s144
      %s146 = sphi 0, %s144
      %s147 = sphi 0, %s146
      %s161 = sphi 0, %s147
      %s165 = sphi 0, %s165
      %s167 = sphi 0, %s165
      %s168 = sphi 0, %s167
      %s182 = sphi 0, %s168
      %s186 = sphi 0, %s186
      %s188 = sphi 0, %s186
      %s189 = sphi 0, %s188
      %s203 = sphi 0, %s189
      %s211 = sphi 0, %s213
      %s214 = sphi 0, %s211
      %s215 = sphi 0, %s214
      %s231 = sphi 0, %s215
    $region4: #{attention.1} parent=1 // loop_header_branch
      %19 = sbr.rel (%p17) target = $region8
    $region5: #{attention.1} parent=1 // loop_body
      %s21 = ssub.s32 %s16, 1
      %s22 = ssub.s32 %s16, 2
      %s29 = sadd.s32 1, %s24
      %p30 = scmp.ge.s32.totalorder %s29, 1
      %s31 = scalar_select %p30, 0, %s29
      %s32 = sadd.s32 1, %s23
      %s33 = scalar_select %p30, %s32, %s23
      %p34 = scmp.ge.s32.totalorder %s33, 2
      %s35 = scalar_select %p34, 0, %s33
      %s36 = ssub.s32 %s23, %s35
      %s37 = ssub.s32 %s24, %s31
      %s38 = sor.u32 %s36, %s37
      %p39 = scmp.eq.s32.totalorder %s38, 0
      %s41 = sadd.s32 %s40, 1
      %s42 = scalar_select %p39, %s40, %s41
      %p45 = pneg %p39
      %p46 = scmp.eq.s32.totalorder %s16, 1
      %p47 = por %p45, %p46
      %p48 = scmp.ne.s32.totalorder %s40, %s43
      %p49 = scmp.eq.s32.totalorder %s16, 0
      %p50 = por %p48, %p49
      %p51 = scmp.ne.s32.totalorder %s40, %s43
      %p52 = scmp.eq.s32.totalorder %s21, 1
      %p53 = por %p51, %p52
      %p54 = scmp.ne.s32.totalorder %s43, %s44
      %p55 = scmp.eq.s32.totalorder %s21, 0
      %p56 = por %p54, %p55
      %p57 = scmp.ne.s32.totalorder %s43, %s44
      %p58 = scmp.eq.s32.totalorder %s22, 1
      %p59 = por %p57, %p58
      %p61 = scmp.ne.s32.totalorder %s44, %s60
      %p62 = scmp.eq.s32.totalorder %s22, 0
      %p63 = por %p61, %p62
      %s64 = ssub.s32 %s23, %s35
      %p65 = scmp.eq.s32.totalorder %s64, 0
      %s67 = sadd.s32 %s66, 1
      %s68 = scalar_select %p65, %s66, %s67
      %p71 = pneg %p65
      %p72 = scmp.eq.s32.totalorder %s16, 1
      %p73 = por %p71, %p72
      %p74 = scmp.ne.s32.totalorder %s66, %s69
      %p75 = scmp.eq.s32.totalorder %s16, 0
      %p76 = por %p74, %p75
      %p77 = scmp.ne.s32.totalorder %s66, %s69
      %p78 = scmp.eq.s32.totalorder %s21, 1
      %p79 = por %p77, %p78
      %p80 = scmp.ne.s32.totalorder %s69, %s70
      %p81 = scmp.eq.s32.totalorder %s21, 0
      %p82 = por %p80, %p81
      %p83 = scmp.ne.s32.totalorder %s69, %s70
      %p84 = scmp.eq.s32.totalorder %s22, 1
      %p85 = por %p83, %p84
      %p87 = scmp.ne.s32.totalorder %s70, %s86
      %p88 = scmp.eq.s32.totalorder %s22, 0
      %p89 = por %p87, %p88
      %s90 = ssub.s32 %s23, %s35
      %p91 = scmp.eq.s32.totalorder %s90, 0
      %s93 = sadd.s32 %s92, 1
      %s94 = scalar_select %p91, %s92, %s93
      %p97 = pneg %p91
      %p98 = scmp.eq.s32.totalorder %s16, 1
      %p99 = por %p97, %p98
      %p100 = scmp.ne.s32.totalorder %s92, %s95
      %p101 = scmp.eq.s32.totalorder %s16, 0
      %p102 = por %p100, %p101
      %p103 = scmp.ne.s32.totalorder %s92, %s95
      %p104 = scmp.eq.s32.totalorder %s21, 1
      %p105 = por %p103, %p104
      %p106 = scmp.ne.s32.totalorder %s95, %s96
      %p107 = scmp.eq.s32.totalorder %s21, 0
      %p108 = por %p106, %p107
      %p109 = scmp.ne.s32.totalorder %s95, %s96
      %p110 = scmp.eq.s32.totalorder %s22, 1
      %p111 = por %p109, %p110
      %p113 = scmp.ne.s32.totalorder %s96, %s112
      %p114 = scmp.eq.s32.totalorder %s22, 0
      %p115 = por %p113, %p114
      %s116 = ssub.s32 %s23, %s35
      %s117 = ssub.s32 %s24, %s31
      %s118 = sor.u32 %s116, %s117
      %p119 = scmp.eq.s32.totalorder %s118, 0
      %s121 = sadd.s32 %s120, 1
      %s122 = scalar_select %p119, %s120, %s121
      %p125 = pneg %p119
      %p126 = scmp.eq.s32.totalorder %s16, 1
      %p127 = por %p125, %p126
      %p128 = scmp.ne.s32.totalorder %s120, %s123
      %p129 = scmp.eq.s32.totalorder %s16, 0
      %p130 = por %p128, %p129
      %p131 = scmp.ne.s32.totalorder %s120, %s123
      %p132 = scmp.eq.s32.totalorder %s21, 1
      %p133 = por %p131, %p132
      %p134 = scmp.ne.s32.totalorder %s123, %s124
      %p135 = scmp.eq.s32.totalorder %s21, 0
      %p136 = por %p134, %p135
      %p137 = scmp.ne.s32.totalorder %s123, %s124
      %p138 = scmp.eq.s32.totalorder %s22, 1
      %p139 = por %p137, %p138
      %p141 = scmp.ne.s32.totalorder %s124, %s140
      %p142 = scmp.eq.s32.totalorder %s22, 0
      %p143 = por %p141, %p142
      %s145 = sadd.s32 %s144, 1
      %p148 = scmp.eq.s32.totalorder %s16, 1
      %p149 = scmp.ne.s32.totalorder %s144, %s146
      %p150 = scmp.eq.s32.totalorder %s16, 0
      %p151 = por %p149, %p150
      %p152 = scmp.ne.s32.totalorder %s144, %s146
      %p153 = scmp.eq.s32.totalorder %s21, 1
      %p154 = por %p152, %p153
      %p155 = scmp.ne.s32.totalorder %s146, %s147
      %p156 = scmp.eq.s32.totalorder %s21, 0
      %p157 = por %p155, %p156
      %p158 = scmp.ne.s32.totalorder %s146, %s147
      %p159 = scmp.eq.s32.totalorder %s22, 1
      %p160 = por %p158, %p159
      %p162 = scmp.ne.s32.totalorder %s147, %s161
      %p163 = scmp.eq.s32.totalorder %s22, 0
      %p164 = por %p162, %p163
      %s166 = sadd.s32 %s165, 1
      %p169 = scmp.eq.s32.totalorder %s16, 1
      %p170 = scmp.ne.s32.totalorder %s165, %s167
      %p171 = scmp.eq.s32.totalorder %s16, 0
      %p172 = por %p170, %p171
      %p173 = scmp.ne.s32.totalorder %s165, %s167
      %p174 = scmp.eq.s32.totalorder %s21, 1
      %p175 = por %p173, %p174
      %p176 = scmp.ne.s32.totalorder %s167, %s168
      %p177 = scmp.eq.s32.totalorder %s21, 0
      %p178 = por %p176, %p177
      %p179 = scmp.ne.s32.totalorder %s167, %s168
      %p180 = scmp.eq.s32.totalorder %s22, 1
      %p181 = por %p179, %p180
      %p183 = scmp.ne.s32.totalorder %s168, %s182
      %p184 = scmp.eq.s32.totalorder %s22, 0
      %p185 = por %p183, %p184
      %s187 = sadd.s32 %s186, 1
      %p190 = scmp.eq.s32.totalorder %s16, 1
      %p191 = scmp.ne.s32.totalorder %s186, %s188
      %p192 = scmp.eq.s32.totalorder %s16, 0
      %p193 = por %p191, %p192
      %p194 = scmp.ne.s32.totalorder %s186, %s188
      %p195 = scmp.eq.s32.totalorder %s21, 1
      %p196 = por %p194, %p195
      %p197 = scmp.ne.s32.totalorder %s188, %s189
      %p198 = scmp.eq.s32.totalorder %s21, 0
      %p199 = por %p197, %p198
      %p200 = scmp.ne.s32.totalorder %s188, %s189
      %p201 = scmp.eq.s32.totalorder %s22, 1
      %p202 = por %p200, %p201
      %p204 = scmp.ne.s32.totalorder %s189, %s203
      %p205 = scmp.eq.s32.totalorder %s22, 0
      %p206 = por %p204, %p205
      %s207 = ssub.s32 %s23, %s35
      %s208 = ssub.s32 %s24, %s31
      %s209 = sor.u32 %s207, %s208
      %p210 = scmp.eq.s32.totalorder %s209, 0
      %s212 = sadd.s32 %s211, 1
      %s213 = scalar_select %p210, %s211, %s212
      %p216 = pneg %p210
      %p217 = scmp.eq.s32.totalorder %s16, 1
      %p218 = por %p216, %p217
      %p219 = scmp.ne.s32.totalorder %s211, %s214
      %p220 = scmp.eq.s32.totalorder %s16, 0
      %p221 = por %p219, %p220
      %p222 = scmp.ne.s32.totalorder %s211, %s214
      %p223 = scmp.eq.s32.totalorder %s21, 1
      %p224 = por %p222, %p223
      %p225 = scmp.ne.s32.totalorder %s214, %s215
      %p226 = scmp.eq.s32.totalorder %s21, 0
      %p227 = por %p225, %p226
      %p228 = scmp.ne.s32.totalorder %s214, %s215
      %p229 = scmp.eq.s32.totalorder %s22, 1
      %p230 = por %p228, %p229
      %p232 = scmp.ne.s32.totalorder %s215, %s231
      %p233 = scmp.eq.s32.totalorder %s22, 0
      %p234 = por %p232, %p233
      %p235 = scmp.le.s32.totalorder 1, %s16
      %p236 = scmp.lt.s32.totalorder %s16, 3
      %p237 = pnand %p235, %p236
      %p238 = pneg %p237
      // Predicated region
      $region9: #{attention.1} parent=5 // pred_check
        _
      $region10: #{attention.1} parent=5 // pred_check_branch
        %240 = sbr.rel (%p237) target = $region12
      $region11: #{attention.1} parent=5 // pred_region
        %s241 = ssub.s32 %s16, 1
        // Predicated region
        $region13: #{attention.1} parent=11 // pred_check
          %p242 = pneg %p157
        $region14: #{attention.1} parent=11 // pred_check_branch
          %244 = sbr.rel (%p242) target = $region16
        $region15: #{attention.1} parent=11 // pred_region
          _
        $region16: #{attention.1} parent=11 // pred_fallthru
          _
        // Predicated region
        $region17: #{attention.1} parent=11 // pred_check
          %p245 = pneg %p178
        $region18: #{attention.1} parent=11 // pred_check_branch
          %247 = sbr.rel (%p245) target = $region20
        $region19: #{attention.1} parent=11 // pred_region
          _
        $region20: #{attention.1} parent=11 // pred_fallthru
          _
        // Predicated region
        $region21: #{attention.1} parent=11 // pred_check
          %p248 = pneg %p199
        $region22: #{attention.1} parent=11 // pred_check_branch
          %250 = sbr.rel (%p248) target = $region24
        $region23: #{attention.1} parent=11 // pred_region
          _
        $region24: #{attention.1} parent=11 // pred_fallthru
          _
      $region12: #{attention.1} parent=5 // pred_fallthru
        _
      %p251 = scmp.lt.s32.totalorder %s16, 2
      // Predicated region
      $region25: #{attention.1} parent=5 // pred_check
        %p252 = pneg %p251
      $region26: #{attention.1} parent=5 // pred_check_branch
        %254 = sbr.rel (%p252) target = $region28
      $region27: #{attention.1} parent=5 // pred_region
        // Predicated region
        $region29: #{attention.1} parent=27 // pred_check
          %p255 = pneg %p50
        $region30: #{attention.1} parent=27 // pred_check_branch
          %257 = sbr.rel (%p255) target = $region32
        $region31: #{attention.1} parent=27 // pred_region
          %p258 = scmp.lt.s32.totalorder %s23, 1
          %s259 = scalar_select %p258, %s23, 1
          %p260 = scmp.lt.s32.totalorder %s24, 0
          %s261 = scalar_select %p260, %s24, 0
          %s262 = sadd.s32 %s261, %s259
          %s263 = smul.addr %s262, 4
          %s264 = scalar_lea.vmem %s0, %s263
        $region32: #{attention.1} parent=27 // pred_fallthru
          _
        // Predicated region
        $region33: #{attention.1} parent=27 // pred_check
          %p265 = pneg %p76
        $region34: #{attention.1} parent=27 // pred_check_branch
          %267 = sbr.rel (%p265) target = $region36
        $region35: #{attention.1} parent=27 // pred_region
          %p268 = scmp.lt.s32.totalorder %s23, 1
          %s269 = scalar_select %p268, %s23, 1
          %s270 = smul.addr %s269, 4
          %s271 = scalar_lea.vmem %s1, %s270
        $region36: #{attention.1} parent=27 // pred_fallthru
          _
        // Predicated region
        $region37: #{attention.1} parent=27 // pred_check
          %p272 = pneg %p102
        $region38: #{attention.1} parent=27 // pred_check_branch
          %274 = sbr.rel (%p272) target = $region40
        $region39: #{attention.1} parent=27 // pred_region
          %p275 = scmp.lt.s32.totalorder %s23, 1
          %s276 = scalar_select %p275, %s23, 1
          %s277 = smul.addr %s276, 4
          %s278 = scalar_lea.vmem %s2, %s277
        $region40: #{attention.1} parent=27 // pred_fallthru
          _
        // Predicated region
        $region41: #{attention.1} parent=27 // pred_check
          %p279 = pneg %p130
        $region42: #{attention.1} parent=27 // pred_check_branch
          %281 = sbr.rel (%p279) target = $region44
        $region43: #{attention.1} parent=27 // pred_region
          %p282 = scmp.lt.s32.totalorder %s23, 1
          %s283 = scalar_select %p282, %s23, 1
          %p284 = scmp.lt.s32.totalorder %s24, 0
          %s285 = scalar_select %p284, %s24, 0
          %s286 = sadd.s32 %s285, %s283
          %s287 = smul.addr %s286, 4
          %s288 = scalar_lea.vmem %s3, %s287
        $region44: #{attention.1} parent=27 // pred_fallthru
          _
      $region28: #{attention.1} parent=5 // pred_fallthru
        _
      %p289 = scmp.le.s32.totalorder 1, %s16
      %p290 = scmp.lt.s32.totalorder %s16, 3
      %p291 = pnand %p289, %p290
      %p292 = pneg %p291
      // Predicated region
      $region45: #{attention.1} parent=5 // pred_check
        _
      $region46: #{attention.1} parent=5 // pred_check_branch
        %294 = sbr.rel (%p291) target = $region48
      $region47: #{attention.1} parent=5 // pred_region
        %s295 = ssub.s32 %s16, 1
        %p296 = scmp.lt.s32.totalorder %s25, 1
        %s297 = scalar_select %p296, %s25, 1
        %p298 = scmp.lt.s32.totalorder %s26, 0
        %s299 = scalar_select %p298, %s26, 0
        %s300 = sadd.s32 %s299, %s297
        %s301 = smul.addr %s300, 4
        %s302 = scalar_lea.vmem %s0, %s301
        %p303 = pneg %p56
        %p304 = pneg %p53
        %p305 = scmp.lt.s32.totalorder %s25, 1
        %s306 = scalar_select %p305, %s25, 1
        %s307 = smul.addr %s306, 4
        %s308 = scalar_lea.vmem %s1, %s307
        %p309 = pneg %p82
        %p310 = pneg %p79
        %p311 = scmp.lt.s32.totalorder %s25, 1
        %s312 = scalar_select %p311, %s25, 1
        %s313 = smul.addr %s312, 4
        %s314 = scalar_lea.vmem %s2, %s313
        %p315 = pneg %p108
        %p316 = pneg %p105
        %p317 = scmp.lt.s32.totalorder %s25, 1
        %s318 = scalar_select %p317, %s25, 1
        %p319 = scmp.lt.s32.totalorder %s26, 0
        %s320 = scalar_select %p319, %s26, 0
        %s321 = sadd.s32 %s320, %s318
        %s322 = smul.addr %s321, 4
        %s323 = scalar_lea.vmem %s3, %s322
        %p324 = pneg %p136
        %p325 = pneg %p133
        %p326 = pneg %p157
        %p327 = pneg %p154
        %p328 = pneg %p178
        %p329 = pneg %p175
        %p330 = pneg %p199
        %p331 = pneg %p196
        %p332 = pneg %p227
        %p333 = pneg %p224
        %s334 = sand.u32 %s214, 1
        %s335 = scalar_lea.sflag [#allocation5], %s334
        %s336 = sand.u32 %s214, 1
        %s337 = smul.addr %s336, 8
        %s338 = scalar_lea.vmem [#allocation4], %s337
        %p339 = scmp.lt.s32.totalorder %s25, 1
        %s340 = scalar_select %p339, %s25, 1
        %p341 = scmp.lt.s32.totalorder %s26, 0
        %s342 = scalar_select %p341, %s26, 0
        %s343 = sadd.s32 %s342, %s340
        %s344 = smul.addr %s343, 4
        %s345 = scalar_lea.vmem %s0, %s344
        %p346 = scmp.lt.s32.totalorder %s25, 1
        %s347 = scalar_select %p346, %s25, 1
        %s348 = smul.addr %s347, 4
        %s349 = scalar_lea.vmem %s1, %s348
        %p350 = scmp.lt.s32.totalorder %s25, 1
        %s351 = scalar_select %p350, %s25, 1
        %s352 = smul.addr %s351, 4
        %s353 = scalar_lea.vmem %s2, %s352
        %p354 = scmp.lt.s32.totalorder %s25, 1
        %s355 = scalar_select %p354, %s25, 1
        %p356 = scmp.lt.s32.totalorder %s26, 0
        %s357 = scalar_select %p356, %s26, 0
        %s358 = sadd.s32 %s357, %s355
        %s359 = smul.addr %s358, 4
        %s360 = scalar_lea.vmem %s3, %s359
        %p364 = scmp.eq.s32.totalorder %s26, 0
        // Predicated region
        $region49: #{attention.1} parent=47 // pred_check
          %p365 = pneg %p364
        $region50: #{attention.1} parent=47 // pred_check_branch
          %367 = sbr.rel (%p365) target = $region52
        $region51: #{attention.1} parent=47 // pred_region
          %v368 = vld [vmem:[%s349] sm:$0xf]
          %v369 = vld [vmem:[%s5] sm:$0xf]
          %v370 = vld [vmem:[%s5 + $0x4] sm:$0xf]
          %v371 = vld [vmem:[%s5 + $0x8] sm:$0xf]
          %v372 = vld [vmem:[%s5 + $0xc] sm:$0xf]
          %v377 = vunpack.c.l.b16 %v369
          %v378 = vunpack.c.l.b16 %v370
          %v379 = vunpack.c.l.b16 %v371
          %v380 = vunpack.c.l.b16 %v372
          %v381 = vpack.c.b16 %v378, %v377
          %v382 = vpack.c.b16 %v380, %v379
          %vm385 = vcmask 261120
          %v387 = vsel %vm385, %v368, 0
          %389 = vmatprep.subr.bf16.mxu0 0
          %390 = vmatpush1.bf16.msra.mxu0 %v381
          %391 = vmatprep.subr.bf16.mxu0 0
          %392 = vmatpush1.bf16.msra.mxu0 %v382
          %393 = vmatprep.subr.bf16.mxu0 0
          %394 = vmatpush1.bf16.msra.mxu0 0
          %395 = vmatprep.subr.bf16.mxu0 0
          %396 = vmatpush1.bf16.msra.mxu0 0
          %397 = vmatprep.subr.bf16.mxu0 0
          %398 = vmatpush1.bf16.msra.mxu0 0
          %399 = vmatprep.subr.bf16.mxu0 0
          %400 = vmatpush1.bf16.msra.mxu0 0
          %401 = vmatprep.subr.bf16.mxu0 0
          %402 = vmatpush1.bf16.msra.mxu0 0
          %403 = vmatprep.subr.bf16.mxu0 0
          %404 = vmatpush1.bf16.msra.mxu0 0
          %405 = vmatprep.subr.bf16.mxu0 0
          %406 = vmatpush1.bf16.msra.mxu0 0
          %407 = vmatprep.subr.bf16.mxu0 0
          %408 = vmatpush1.bf16.msra.mxu0 0
          %409 = vmatprep.subr.bf16.mxu0 0
          %410 = vmatpush1.bf16.msra.mxu0 0
          %411 = vmatprep.subr.bf16.mxu0 0
          %412 = vmatpush1.bf16.msra.mxu0 0
          %413 = vmatprep.subr.bf16.mxu0 0
          %414 = vmatpush1.bf16.msra.mxu0 0
          %415 = vmatprep.subr.bf16.mxu0 0
          %416 = vmatpush1.bf16.msra.mxu0 0
          %417 = vmatprep.subr.bf16.mxu0 0
          %418 = vmatpush1.bf16.msra.mxu0 0
          %419 = vmatprep.subr.bf16.mxu0 0
          %420 = vmatpush1.bf16.msra.mxu0 0
          %421 = vmatprep.mubr.bf16.mxu0 0
          %422 = vmatmul.mubr.bf16.gmra.mrb[0].mxu0 %v387
          %v423 = vpop.f32.mrb[0].mxu0
          %v424 = vadd.f32 0.0, %v423
          %v425 = vpop.f32.mrb[0].mxu0
          %v426 = vpop.f32.mrb[0].mxu0
          %v427 = vpop.f32.mrb[0].mxu0
          %428 = vdwg.mxu0
          %vm429 = vcmask 130048
          %430 = vst.msk [vmem:[#allocation2] sm:$0xff] %vm429, %v424
          %v431 = vld [vmem:[%s353] sm:$0xf]
          %v432 = vld [vmem:[%s6] sm:$0xf]
          %v433 = vld [vmem:[%s6 + $0x4] sm:$0xf]
          %v434 = vld [vmem:[%s6 + $0x8] sm:$0xf]
          %v435 = vld [vmem:[%s6 + $0xc] sm:$0xf]
          %v440 = vunpack.c.l.b16 %v432
          %v441 = vunpack.c.l.b16 %v433
          %v442 = vunpack.c.l.b16 %v434
          %v443 = vunpack.c.l.b16 %v435
          %v444 = vpack.c.b16 %v441, %v440
          %v445 = vpack.c.b16 %v443, %v442
          %v449 = vsel %vm385, %v431, 0
          %451 = vmatprep.subr.bf16.mxu0 0
          %452 = vmatpush1.bf16.msra.mxu0 %v444
          %453 = vmatprep.subr.bf16.mxu0 0
          %454 = vmatpush1.bf16.msra.mxu0 %v445
          %455 = vmatprep.subr.bf16.mxu0 0
          %456 = vmatpush1.bf16.msra.mxu0 0
          %457 = vmatprep.subr.bf16.mxu0 0
          %458 = vmatpush1.bf16.msra.mxu0 0
          %459 = vmatprep.subr.bf16.mxu0 0
          %460 = vmatpush1.bf16.msra.mxu0 0
          %461 = vmatprep.subr.bf16.mxu0 0
          %462 = vmatpush1.bf16.msra.mxu0 0
          %463 = vmatprep.subr.bf16.mxu0 0
          %464 = vmatpush1.bf16.msra.mxu0 0
          %465 = vmatprep.subr.bf16.mxu0 0
          %466 = vmatpush1.bf16.msra.mxu0 0
          %467 = vmatprep.subr.bf16.mxu0 0
          %468 = vmatpush1.bf16.msra.mxu0 0
          %469 = vmatprep.subr.bf16.mxu0 0
          %470 = vmatpush1.bf16.msra.mxu0 0
          %471 = vmatprep.subr.bf16.mxu0 0
          %472 = vmatpush1.bf16.msra.mxu0 0
          %473 = vmatprep.subr.bf16.mxu0 0
          %474 = vmatpush1.bf16.msra.mxu0 0
          %475 = vmatprep.subr.bf16.mxu0 0
          %476 = vmatpush1.bf16.msra.mxu0 0
          %477 = vmatprep.subr.bf16.mxu0 0
          %478 = vmatpush1.bf16.msra.mxu0 0
          %479 = vmatprep.subr.bf16.mxu0 0
          %480 = vmatpush1.bf16.msra.mxu0 0
          %481 = vmatprep.subr.bf16.mxu0 0
          %482 = vmatpush1.bf16.msra.mxu0 0
          %483 = vmatprep.mubr.bf16.mxu0 0
          %484 = vmatmul.mubr.bf16.gmra.mrb[0].mxu0 %v449
          %v485 = vpop.f32.mrb[0].mxu0
          %v486 = vadd.f32 0.0, %v485
          %v487 = vpop.f32.mrb[0].mxu0
          %v488 = vpop.f32.mrb[0].mxu0
          %v489 = vpop.f32.mrb[0].mxu0
          %490 = vdwg.mxu0
          %491 = vst.msk [vmem:[#allocation3] sm:$0xff] %vm429, %v486
        $region52: #{attention.1} parent=47 // pred_fallthru
          _
        %v492 = vld [vmem:[%s345] sm:$0xf]
        %v493 = vld [vmem:[%s4] sm:$0xf]
        %v494 = vld [vmem:[%s4 + $0x4] sm:$0xf]
        %v495 = vld [vmem:[%s4 + $0x8] sm:$0xf]
        %v496 = vld [vmem:[%s4 + $0xc] sm:$0xf]
        %v501 = vunpack.c.l.b16 %v493
        %v502 = vunpack.c.l.b16 %v494
        %v503 = vunpack.c.l.b16 %v495
        %v504 = vunpack.c.l.b16 %v496
        %v505 = vpack.c.b16 %v502, %v501
        %v506 = vpack.c.b16 %v504, %v503
        %vm509 = vcmask 261120
        %v511 = vsel %vm509, %v492, 0
        %513 = vmatprep.subr.bf16.mxu0 0
        %514 = vmatpush1.bf16.msra.mxu0 %v505
        %515 = vmatprep.subr.bf16.mxu0 0
        %516 = vmatpush1.bf16.msra.mxu0 %v506
        %517 = vmatprep.subr.bf16.mxu0 0
        %518 = vmatpush1.bf16.msra.mxu0 0
        %519 = vmatprep.subr.bf16.mxu0 0
        %520 = vmatpush1.bf16.msra.mxu0 0
        %521 = vmatprep.subr.bf16.mxu0 0
        %522 = vmatpush1.bf16.msra.mxu0 0
        %523 = vmatprep.subr.bf16.mxu0 0
        %524 = vmatpush1.bf16.msra.mxu0 0
        %525 = vmatprep.subr.bf16.mxu0 0
        %526 = vmatpush1.bf16.msra.mxu0 0
        %527 = vmatprep.subr.bf16.mxu0 0
        %528 = vmatpush1.bf16.msra.mxu0 0
        %529 = vmatprep.subr.bf16.mxu0 0
        %530 = vmatpush1.bf16.msra.mxu0 0
        %531 = vmatprep.subr.bf16.mxu0 0
        %532 = vmatpush1.bf16.msra.mxu0 0
        %533 = vmatprep.subr.bf16.mxu0 0
        %534 = vmatpush1.bf16.msra.mxu0 0
        %535 = vmatprep.subr.bf16.mxu0 0
        %536 = vmatpush1.bf16.msra.mxu0 0
        %537 = vmatprep.subr.bf16.mxu0 0
        %538 = vmatpush1.bf16.msra.mxu0 0
        %539 = vmatprep.subr.bf16.mxu0 0
        %540 = vmatpush1.bf16.msra.mxu0 0
        %541 = vmatprep.subr.bf16.mxu0 0
        %542 = vmatpush1.bf16.msra.mxu0 0
        %543 = vmatprep.subr.bf16.mxu0 0
        %544 = vmatpush1.bf16.msra.mxu0 0
        %545 = vmatprep.mubr.bf16.mxu0 0
        %546 = vmatmul.mubr.bf16.gmra.mrb[0].mxu0 %v511
        %v547 = vpop.f32.mrb[0].mxu0
        %v548 = vadd.f32 0.0, %v547
        %v549 = vpop.f32.mrb[0].mxu0
        %v550 = vpop.f32.mrb[0].mxu0
        %v551 = vpop.f32.mrb[0].mxu0
        %552 = vdwg.mxu0
        %v553 = vld [vmem:[#allocation2] sm:$0xff]
        %vm554 = vcmask 130048
        %v556 = vsel %vm554, %v548, 0
        %v559 = vsel %vm554, %v553, 0
        %561 = vmatprep.subr.mxu0 0.0
        %562 = vmatpush1.xpose.msra.mxu0 %v559
        %563 = vmatprep.subr.mxu0 0.0
        %564 = vmatpush1.xpose.msra.mxu0 0.0
        %565 = vmatprep.subr.mxu0 0.0
        %566 = vmatpush1.xpose.msra.mxu0 0.0
        %567 = vmatprep.subr.mxu0 0.0
        %568 = vmatpush1.xpose.msra.mxu0 0.0
        %569 = vmatprep.subr.mxu0 0.0
        %570 = vmatpush1.xpose.msra.mxu0 0.0
        %571 = vmatprep.subr.mxu0 0.0
        %572 = vmatpush1.xpose.msra.mxu0 0.0
        %573 = vmatprep.subr.mxu0 0.0
        %574 = vmatpush1.xpose.msra.mxu0 0.0
        %575 = vmatprep.subr.mxu0 0.0
        %576 = vmatpush1.xpose.msra.mxu0 0.0
        %577 = vmatprep.subr.mxu0 0.0
        %578 = vmatpush1.xpose.msra.mxu0 0.0
        %579 = vmatprep.subr.mxu0 0.0
        %580 = vmatpush1.xpose.msra.mxu0 0.0
        %581 = vmatprep.subr.mxu0 0.0
        %582 = vmatpush1.xpose.msra.mxu0 0.0
        %583 = vmatprep.subr.mxu0 0.0
        %584 = vmatpush1.xpose.msra.mxu0 0.0
        %585 = vmatprep.subr.mxu0 0.0
        %586 = vmatpush1.xpose.msra.mxu0 0.0
        %587 = vmatprep.subr.mxu0 0.0
        %588 = vmatpush1.xpose.msra.mxu0 0.0
        %589 = vmatprep.subr.mxu0 0.0
        %590 = vmatpush1.xpose.msra.mxu0 0.0
        %591 = vmatprep.subr.mxu0 0.0
        %592 = vmatpush1.xpose.msra.mxu0 0.0
        %593 = vmatprep.subr.mxu0 0.0
        %594 = vmatpush1.xpose.msra.mxu0 0.0
        %595 = vmatprep.subr.mxu0 0.0
        %596 = vmatpush1.xpose.msra.mxu0 0.0
        %597 = vmatprep.subr.mxu0 0.0
        %598 = vmatpush1.xpose.msra.mxu0 0.0
        %599 = vmatprep.subr.mxu0 0.0
        %600 = vmatpush1.xpose.msra.mxu0 0.0
        %601 = vmatprep.subr.mxu0 0.0
        %602 = vmatpush1.xpose.msra.mxu0 0.0
        %603 = vmatprep.subr.mxu0 0.0
        %604 = vmatpush1.xpose.msra.mxu0 0.0
        %605 = vmatprep.subr.mxu0 0.0
        %606 = vmatpush1.xpose.msra.mxu0 0.0
        %607 = vmatprep.subr.mxu0 0.0
        %608 = vmatpush1.xpose.msra.mxu0 0.0
        %609 = vmatprep.subr.mxu0 0.0
        %610 = vmatpush1.xpose.msra.mxu0 0.0
        %611 = vmatprep.subr.mxu0 0.0
        %612 = vmatpush1.xpose.msra.mxu0 0.0
        %613 = vmatprep.subr.mxu0 0.0
        %614 = vmatpush1.xpose.msra.mxu0 0.0
        %615 = vmatprep.subr.mxu0 0.0
        %616 = vmatpush1.xpose.msra.mxu0 0.0
        %617 = vmatprep.subr.mxu0 0.0
        %618 = vmatpush1.xpose.msra.mxu0 0.0
        %619 = vmatprep.subr.mxu0 0.0
        %620 = vmatpush1.xpose.msra.mxu0 0.0
        %621 = vmatprep.subr.mxu0 0.0
        %622 = vmatpush1.xpose.msra.mxu0 0.0
        %623 = vmatprep.subr.mxu0 0.0
        %624 = vmatpush1.xpose.msra.mxu0 0.0
        %625 = vmatprep.mubr.f32.mxu0 0.0
        %626 = vmatmul.mubr.f32.gmra.mrb[0].mxu0 %v556
        %v627 = vpop.f32.mrb[0].mxu0
        %v628 = vadd.f32 0.0, %v627
        %v629 = vpop.f32.mrb[0].mxu0
        %630 = vdwg.mxu0
        %v631 = vld [vmem:[%s360] sm:$0xf]
        %vm632 = vcmp.eq.bf16.partialorder %v631, 0
        %v633 = vsel %vm632, 65537, 0
        %v634 = vunpack.c.l.b16 %v633
        %vm635 = vcmp.ne.s32.totalorder %v634, 0
        %v636 = vsel %vm635, -1e+20, %v628
        %vm637 = vcmask 64512
        %v638 = vsel %vm637, %v636, -inf
        %639 = vmax.xlane.f32.xlu0 %v638
        %v640 = vpop.xlane.xlu0 %639
        %v641 = vsub.f32 %v636, %v640
        %v642 = vmul.f32 %v641, 1.442695
        %v643 = vpow.pop %v642
        %v644 = vsel %vm637, %v643, 0.0
        %645 = vadd.xlane.f32.xlu0 %v644
        %v646 = vpop.xlane.xlu0 %645
        %v647 = vrcp.pop %v646
        %v648 = vmul.f32 %v643, %v647
        %v649 = vld [vmem:[#allocation3] sm:$0xff]
        %v651 = vsel %vm637, %v648, 0
        %653 = vmatprep.subr.mxu0 0.0
        %654 = vmatpush1.msra.mxu0 %v649
        %655 = vmatprep.subr.mxu0 0.0
        %656 = vmatpush1.msra.mxu0 0.0
        %657 = vmatprep.subr.mxu0 0.0
        %658 = vmatpush1.msra.mxu0 0.0
        %659 = vmatprep.subr.mxu0 0.0
        %660 = vmatpush1.msra.mxu0 0.0
        %661 = vmatprep.subr.mxu0 0.0
        %662 = vmatpush1.msra.mxu0 0.0
        %663 = vmatprep.subr.mxu0 0.0
        %664 = vmatpush1.msra.mxu0 0.0
        %665 = vmatprep.subr.mxu0 0.0
        %666 = vmatpush1.msra.mxu0 0.0
        %667 = vmatprep.subr.mxu0 0.0
        %668 = vmatpush1.msra.mxu0 0.0
        %669 = vmatprep.subr.mxu0 0.0
        %670 = vmatpush1.msra.mxu0 0.0
        %671 = vmatprep.subr.mxu0 0.0
        %672 = vmatpush1.msra.mxu0 0.0
        %673 = vmatprep.subr.mxu0 0.0
        %674 = vmatpush1.msra.mxu0 0.0
        %675 = vmatprep.subr.mxu0 0.0
        %676 = vmatpush1.msra.mxu0 0.0
        %677 = vmatprep.subr.mxu0 0.0
        %678 = vmatpush1.msra.mxu0 0.0
        %679 = vmatprep.subr.mxu0 0.0
        %680 = vmatpush1.msra.mxu0 0.0
        %681 = vmatprep.subr.mxu0 0.0
        %682 = vmatpush1.msra.mxu0 0.0
        %683 = vmatprep.subr.mxu0 0.0
        %684 = vmatpush1.msra.mxu0 0.0
        %685 = vmatprep.subr.mxu0 0.0
        %686 = vmatpush1.msra.mxu0 0.0
        %687 = vmatprep.subr.mxu0 0.0
        %688 = vmatpush1.msra.mxu0 0.0
        %689 = vmatprep.subr.mxu0 0.0
        %690 = vmatpush1.msra.mxu0 0.0
        %691 = vmatprep.subr.mxu0 0.0
        %692 = vmatpush1.msra.mxu0 0.0
        %693 = vmatprep.subr.mxu0 0.0
        %694 = vmatpush1.msra.mxu0 0.0
        %695 = vmatprep.subr.mxu0 0.0
        %696 = vmatpush1.msra.mxu0 0.0
        %697 = vmatprep.subr.mxu0 0.0
        %698 = vmatpush1.msra.mxu0 0.0
        %699 = vmatprep.subr.mxu0 0.0
        %700 = vmatpush1.msra.mxu0 0.0
        %701 = vmatprep.subr.mxu0 0.0
        %702 = vmatpush1.msra.mxu0 0.0
        %703 = vmatprep.subr.mxu0 0.0
        %704 = vmatpush1.msra.mxu0 0.0
        %705 = vmatprep.subr.mxu0 0.0
        %706 = vmatpush1.msra.mxu0 0.0
        %707 = vmatprep.subr.mxu0 0.0
        %708 = vmatpush1.msra.mxu0 0.0
        %709 = vmatprep.subr.mxu0 0.0
        %710 = vmatpush1.msra.mxu0 0.0
        %711 = vmatprep.subr.mxu0 0.0
        %712 = vmatpush1.msra.mxu0 0.0
        %713 = vmatprep.subr.mxu0 0.0
        %714 = vmatpush1.msra.mxu0 0.0
        %715 = vmatprep.subr.mxu0 0.0
        %716 = vmatpush1.msra.mxu0 0.0
        %717 = vmatprep.mubr.f32.mxu0 0.0
        %718 = vmatmul.mubr.f32.gmra.mrb[0].mxu0 %v651
        %v719 = vpop.f32.mrb[0].mxu0
        %v720 = vadd.f32 0.0, %v719
        %v721 = vpop.f32.mrb[0].mxu0
        %722 = vdwg.mxu0
        %723 = vst.msk [vmem:[%s338] sm:$0xff] %vm554, %v720
        %s724 = sand.u32 %s214, 1
        %s725 = scalar_lea.sflag [#allocation5], %s724
        %s726 = sand.u32 %s214, 1
        %s727 = smul.addr %s726, 8
        %s728 = scalar_lea.vmem [#allocation4], %s727
        // Predicated region
        $region53: #{attention.1} parent=47 // pred_check
          %p729 = pneg %p224
        $region54: #{attention.1} parent=47 // pred_check_branch
          %731 = sbr.rel (%p729) target = $region56
        $region55: #{attention.1} parent=47 // pred_region
          %s733 = ssub.s32 128, 128
          %734 = vsyncadd %s725, %s733
          %s735 = sadd.s32 %s26, %s25
          %s736 = smul.addr %s735, 128
          %s737 = scalar_lea.hbm %s7, %s736
          %s739 = sshll.u32 %s728, 4
          %s740 = int_to_ptr.vmem [resolvable:$true] %s739
          %742 = dma.vmem_to_hbm [thread:$0]  %s740, 128, %s737, %s725
        $region56: #{attention.1} parent=47 // pred_fallthru
          _
      $region48: #{attention.1} parent=5 // pred_fallthru
        _
      %p743 = scmp.le.s32.totalorder 2, %s16
      // Predicated region
      $region57: #{attention.1} parent=5 // pred_check
        %p744 = pneg %p743
      $region58: #{attention.1} parent=5 // pred_check_branch
        %746 = sbr.rel (%p744) target = $region60
      $region59: #{attention.1} parent=5 // pred_region
        %s747 = ssub.s32 %s16, 2
        // Predicated region
        $region61: #{attention.1} parent=59 // pred_check
          %p748 = pneg %p230
        $region62: #{attention.1} parent=59 // pred_check_branch
          %750 = sbr.rel (%p748) target = $region64
        $region63: #{attention.1} parent=59 // pred_region
          %s751 = sand.u32 %s215, 1
          %s752 = scalar_lea.sflag [#allocation5], %s751
          %s753 = sand.u32 %s215, 1
          %s754 = smul.addr %s753, 8
          %s755 = scalar_lea.vmem [#allocation4], %s754
          %756 = dma.done %s752, 128
        $region64: #{attention.1} parent=59 // pred_fallthru
          _
      $region60: #{attention.1} parent=5 // pred_fallthru
        _
    $region6: #{attention.1} parent=1 // loop_footer
      %s20 = sadd.s32 1, %s16
    $region7: #{attention.1} parent=1 // loop_footer_branch
      %15 = sbr.rel target = $region3
    $region8: #{attention.1} parent=1 // loop_exit
      _
    %757 = vsyncpa [#allocation5], 1
    %s758 = scalar_lea.sflag [#allocation5], 1
    %759 = vsyncpa %s758, 1

</llo_original>
